<compile_context>
chip_gen: v7x
topology: tpu7x:2x2x1
jax: 0.10.0
libtpu: 0.0.40
codegen_flags: <defaults>
</compile_context>

<pallas_src>
import jax
import jax.numpy as jnp
from jax import lax
from jax.experimental import pallas as pl
from jax.experimental.pallas import tpu as pltpu

EPS = 1e-5


# ---------------------------------------------------------------------------
# Kernel body: fused LayerNorm over the last dim of a (block_rows, D) tile.
# ---------------------------------------------------------------------------
def _layernorm_fc_kernel(x_ref, w_ref, b_ref, o_ref):
    x = x_ref[...].astype(jnp.float32)                    # upcast for stats
    mean = jnp.mean(x, axis=-1, keepdims=True)            # (TB, 1)
    xc = x - mean
    var = jnp.mean(xc * xc, axis=-1, keepdims=True)       # biased variance
    inv = lax.rsqrt(var + EPS)                            # EUP rsqrt
    w = w_ref[...].astype(jnp.float32)                    # (1, D)
    b = b_ref[...].astype(jnp.float32)                    # (1, D)
    o_ref[...] = (xc * inv * w + b).astype(o_ref.dtype)


# ---------------------------------------------------------------------------
# Tile-size selection (per TPU generation, VMEM-budgeted).
# ---------------------------------------------------------------------------
def _round_up(x, m):
    return ((x + m - 1) // m) * m


def _sublane_multiple(dtype):
    itemsize = jnp.dtype(dtype).itemsize
    return max(8, 32 // max(itemsize, 1))   # 8 for f32, 16 for bf16, 32 for i8


def _vmem_capacity_bytes():
    try:
        cap = getattr(pltpu.get_tpu_info(), "vmem_capacity_bytes", None)
        if cap:
            return int(cap)
    except Exception:
        pass
    return 64 * 1024 * 1024  # conservative default (v7x per-TC physical VMEM)


def _pick_block_rows(B, D, dtype):
    row_mult = _sublane_multiple(dtype)
    if B <= row_mult:
        # Single full-array block (block dim == array dim is always legal).
        return B
    itemsize = jnp.dtype(dtype).itemsize
    # Budget: double-buffered x tile + out tile must stay well under VMEM.
    budget = _vmem_capacity_bytes() // 4
    per_row = 4 * D * itemsize               # 2 buffers x (x + out) per row
    max_rows = (budget // max(per_row, 1)) // row_mult * row_mult
    block_rows = max(row_mult, min(1024, max_rows))
    # Keep at least 2 grid steps when the batch allows it (feeds both v7x TCs).
    block_rows = min(block_rows, _round_up(pl.cdiv(B, 2), row_mult))
    # Never larger than the (rounded-up) batch.
    block_rows = max(row_mult, min(block_rows, _round_up(B, row_mult)))
    return block_rows


# ---------------------------------------------------------------------------
# Wrapper: Pallas equivalent of LayerNorm_FC.forward for x: (B, n_out).
# ---------------------------------------------------------------------------
def layer_norm_fc(x, weight, bias):
    assert x.ndim == 2, "LayerNorm_FC with affine=True requires (batch, n_out)"
    B, D = x.shape
    assert weight.shape == (D,) and bias.shape == (D,)

    block_rows = _pick_block_rows(B, D, x.dtype)
    grid = (pl.cdiv(B, block_rows),)

    # VMEM limit: enough for the double-buffered x/out tiles plus params,
    # with headroom below physical capacity.
    itemsize = jnp.dtype(x.dtype).itemsize
    needed = 4 * block_rows * D * itemsize + 2 * D * jnp.dtype(weight.dtype).itemsize
    vmem_limit = int(min(int(0.9 * _vmem_capacity_bytes()),
                         max(32 * 1024 * 1024, 2 * needed)))

    return pl.pallas_call(
        _layernorm_fc_kernel,
        grid=grid,
        in_specs=[
            pl.BlockSpec((block_rows, D), lambda i: (i, 0)),        # x tile
            pl.BlockSpec(memory_space=pltpu.MemorySpace.VMEM),      # weight
            pl.BlockSpec(memory_space=pltpu.MemorySpace.VMEM),      # bias
        ],
        out_specs=pl.BlockSpec((block_rows, D), lambda i: (i, 0)),
        out_shape=jax.ShapeDtypeStruct((B, D), x.dtype),
        compiler_params=pltpu.CompilerParams(
            dimension_semantics=("parallel",),   # shard grid across v7x TCs
            vmem_limit_bytes=vmem_limit,
        ),
    )(x, weight.reshape(1, D), bias.reshape(1, D))


# Pure-JAX reference (matches F.layer_norm: biased variance, eps=1e-5).
def _layer_norm_ref(x, w, b, eps=EPS):
    x32 = x.astype(jnp.float32)
    mean = jnp.mean(x32, axis=-1, keepdims=True)
    var = jnp.mean((x32 - mean) ** 2, axis=-1, keepdims=True)
    out = (x32 - mean) / jnp.sqrt(var + eps) * w.astype(jnp.float32) + b.astype(jnp.float32)
    return out.astype(x.dtype)


if __name__ == "__main__":
    key = jax.random.PRNGKey(0)
    kx, kw, kb = jax.random.split(key, 3)

    n_out = 128  # lane-dense feature dim (full vreg lane width)
    # PyTorch init is weight=1, bias=0; perturb to exercise the affine path.
    weight = 1.0 + 0.1 * jax.random.normal(kw, (n_out,), jnp.float32)
    bias = 0.1 * jax.random.normal(kb, (n_out,), jnp.float32)

    fwd = jax.jit(layer_norm_fc)

    # Even batch: grid of 2 full blocks (both v7x TCs active).
    x = jax.random.normal(kx, (48, n_out), jnp.float32)
    y = jax.block_until_ready(fwd(x, weight, bias))
    assert y.shape == (48, n_out)
    assert bool(jnp.allclose(y, _layer_norm_ref(x, weight, bias), atol=1e-4, rtol=1e-4))

    # Ragged batch: last block partially out of bounds, masked on store.
    x2 = jax.random.normal(kx, (21, n_out), jnp.float32)
    y2 = jax.block_until_ready(fwd(x2, weight, bias))
    assert bool(jnp.allclose(y2, _layer_norm_ref(x2, weight, bias), atol=1e-4, rtol=1e-4))

    # Tiny batch: single full-array block.
    x3 = jax.random.normal(kx, (5, n_out), jnp.float32)
    y3 = jax.block_until_ready(fwd(x3, weight, bias))
    assert bool(jnp.allclose(y3, _layer_norm_ref(x3, weight, bias), atol=1e-4, rtol=1e-4))

    print("KERNEL_OK")
</pallas_src>

<mosaic_0001>
module attributes {stable_mosaic.version = 11 : i64} {
  func.func @_layernorm_fc_kernel(%arg0: i32, %arg1: memref<24x128xf32, #tpu.memory_space<vmem>>, %arg2: memref<1x128xf32, #tpu.memory_space<vmem>>, %arg3: memref<1x128xf32, #tpu.memory_space<vmem>>, %arg4: memref<24x128xf32, #tpu.memory_space<vmem>>) attributes {dimension_semantics = [#tpu.dimension_semantics<parallel>], iteration_bounds = array<i64: 2>, scalar_prefetch = 0 : i64, scratch_operands = 0 : i64, tpu.core_type = #tpu.core_type<tc>, window_params = [{transform_indices = @transform_0, window_bounds = array<i64: 24, 128>}, {pipeline_mode = #tpu.pipeline_mode<synchronous>, transform_indices = @transform_1, window_bounds = array<i64: 1, 128>}, {pipeline_mode = #tpu.pipeline_mode<synchronous>, transform_indices = @transform_2, window_bounds = array<i64: 1, 128>}, {transform_indices = @transform_3, window_bounds = array<i64: 24, 128>}]} {
    %c0 = arith.constant 0 : index
    %c0_0 = arith.constant 0 : index
    %0 = vector.load %arg1[%c0, %c0_0] : memref<24x128xf32, #tpu.memory_space<vmem>>, vector<24x128xf32>
    %cst = arith.constant dense<0.000000e+00> : vector<24xf32>
    %1 = vector.multi_reduction <add>, %0, %cst [1] : vector<24x128xf32> to vector<24xf32>
    %2 = vector.shape_cast %1 : vector<24xf32> to vector<24x1xf32>
    %cst_1 = arith.constant 1.280000e+02 : f32
    %3 = vector.broadcast %cst_1 : f32 to vector<24x1xf32>
    %4 = arith.divf %2, %3 : vector<24x1xf32>
    %5 = vector.broadcast %4 : vector<24x1xf32> to vector<24x128xf32>
    %6 = arith.subf %0, %5 : vector<24x128xf32>
    %7 = arith.mulf %6, %6 : vector<24x128xf32>
    %cst_2 = arith.constant dense<0.000000e+00> : vector<24xf32>
    %8 = vector.multi_reduction <add>, %7, %cst_2 [1] : vector<24x128xf32> to vector<24xf32>
    %9 = vector.shape_cast %8 : vector<24xf32> to vector<24x1xf32>
    %cst_3 = arith.constant 1.280000e+02 : f32
    %10 = vector.broadcast %cst_3 : f32 to vector<24x1xf32>
    %11 = arith.divf %9, %10 : vector<24x1xf32>
    %cst_4 = arith.constant 9.99999974E-6 : f32
    %12 = vector.broadcast %cst_4 : f32 to vector<24x1xf32>
    %13 = arith.addf %11, %12 : vector<24x1xf32>
    %14 = math.rsqrt %13 : vector<24x1xf32>
    %c0_5 = arith.constant 0 : index
    %c0_6 = arith.constant 0 : index
    %15 = vector.load %arg2[%c0_5, %c0_6] : memref<1x128xf32, #tpu.memory_space<vmem>>, vector<1x128xf32>
    %c0_7 = arith.constant 0 : index
    %c0_8 = arith.constant 0 : index
    %16 = vector.load %arg3[%c0_7, %c0_8] : memref<1x128xf32, #tpu.memory_space<vmem>>, vector<1x128xf32>
    %17 = vector.broadcast %14 : vector<24x1xf32> to vector<24x128xf32>
    %18 = arith.mulf %6, %17 : vector<24x128xf32>
    %19 = vector.broadcast %15 : vector<1x128xf32> to vector<24x128xf32>
    %20 = arith.mulf %18, %19 : vector<24x128xf32>
    %21 = vector.broadcast %16 : vector<1x128xf32> to vector<24x128xf32>
    %22 = arith.addf %20, %21 : vector<24x128xf32>
    %c0_9 = arith.constant 0 : index
    %c0_10 = arith.constant 0 : index
    %23 = vector.load %arg4[%c0_9, %c0_10] : memref<24x128xf32, #tpu.memory_space<vmem>>, vector<24x128xf32>
    tpu.vector_store %arg4[%c0_9, %c0_10], %22 {strides = array<i32>} : memref<24x128xf32, #tpu.memory_space<vmem>>, vector<24x128xf32>,
    return
  }
  func.func @transform_0(%arg0: i32) -> (i32, i32) {
    %c0_i32 = arith.constant 0 : i32
    %c0_i32_0 = arith.constant 0 : i32
    return %arg0, %c0_i32 : i32, i32
  }
  func.func @transform_1(%arg0: i32) -> (i32, i32) {
    %c0_i32 = arith.constant 0 : i32
    %c0_i32_0 = arith.constant 0 : i32
    %c0_i32_1 = arith.constant 0 : i32
    return %c0_i32, %c0_i32_0 : i32, i32
  }
  func.func @transform_2(%arg0: i32) -> (i32, i32) {
    %c0_i32 = arith.constant 0 : i32
    %c0_i32_0 = arith.constant 0 : i32
    %c0_i32_1 = arith.constant 0 : i32
    return %c0_i32, %c0_i32_0 : i32, i32
  }
  func.func @transform_3(%arg0: i32) -> (i32, i32) {
    %c0_i32 = arith.constant 0 : i32
    %c0_i32_0 = arith.constant 0 : i32
    return %arg0, %c0_i32 : i32, i32
  }
}

</mosaic_0001>

<llo_original>
// kernel: layer_norm_fc.1
$region0: #{layer_norm_fc.1}
  #allocation0 [shape = 'u32[]', space=smem, size = 0x4, offset = 0x4, fixed_abs, tag = 'smem constant byte address 0x4 - core index']
  #allocation1 [shape = 'u32[144,128]{1,0:T(1,128)}', space=vmem, size = 0x12000, scoped, tag = 'internal scratch']
  %s0 = inlined_call_operand.hbm [shape: f32[48,128], index: 0, kind: input, shape index: {}]
  %s1 = inlined_call_operand.vmem [shape: f32[1,128], index: 1, kind: input, shape index: {}]
  %s2 = inlined_call_operand.vmem [shape: f32[1,128], index: 2, kind: input, shape index: {}]
  %s3 = inlined_call_operand.hbm [shape: f32[48,128], index: 3, kind: output, shape index: {}]
  %s4 = sld [smem:[#allocation0]]
  $region49: #{layer_norm_fc.1} parent=0
    _
  %s6 = ssub.s32 1, %s4
  %s7 = scalar_select 0, %s6, %s4
  $region1: #{layer_norm_fc.1} parent=0
    #allocation2 [shape = 'u8[24576]{0}', space=vmem, size = 0x6000, scoped, tag = 'input window, operand 0']
    #allocation3 [shape = 's32[2]{0}', space=sflag, size = 0x8, scoped, tag = 'scoped memory for layer_norm_fc.1']
    #allocation4 [shape = 's32[2]{0}', space=sflag, size = 0x8, scoped, tag = 'scoped memory for layer_norm_fc.1']
    #allocation5 [shape = 'u8[24576]{0}', space=vmem, size = 0x6000, scoped, tag = 'output window, operand 0']
    %8 = vsyncpa [#allocation3], 0
    %s9 = scalar_lea.sflag [#allocation3], 1
    %10 = vsyncpa %s9, 0
    %11 = vsyncpa [#allocation4], 0
    %s12 = scalar_lea.sflag [#allocation4], 1
    %13 = vsyncpa %s12, 0
    loop: start=0, step=1, limit=4
    $region2: #{layer_norm_fc.1} parent=1 // loop_pre_header
      _
    $region3: #{layer_norm_fc.1} parent=1 // loop_header
      %s15 = sphi 0, %s19
      %p16 = scmp.ge.s32.totalorder %s15, 4
      %s25 = sphi 0, %s27
      %s28 = sphi 0, %s25
      %s29 = sphi 0, %s28
      %s45 = sphi 0, %s29
      %s49 = sphi 0, %s49
      %s51 = sphi 0, %s49
      %s52 = sphi 0, %s51
      %s66 = sphi 0, %s52
      %s70 = sphi 0, %s70
      %s72 = sphi 0, %s70
      %s73 = sphi 0, %s72
      %s87 = sphi 0, %s73
      %s93 = sphi 0, %s95
      %s96 = sphi 0, %s93
      %s97 = sphi 0, %s96
      %s113 = sphi 0, %s97
    $region4: #{layer_norm_fc.1} parent=1 // loop_header_branch
      %18 = sbr.rel (%p16) target = $region8
    $region5: #{layer_norm_fc.1} parent=1 // loop_body
      %s20 = ssub.s32 %s15, 1
      %s21 = ssub.s32 %s15, 2
      %s22 = sadd.s32 %s15, 1
      %s23 = ssub.s32 %s15, %s22
      %p24 = scmp.eq.s32.totalorder %s23, 0
      %s26 = sadd.s32 %s25, 1
      %s27 = scalar_select %p24, %s25, %s26
      %p30 = pneg %p24
      %p31 = scmp.eq.s32.totalorder %s15, 1
      %p32 = por %p30, %p31
      %p33 = scmp.ne.s32.totalorder %s25, %s28
      %p34 = scmp.eq.s32.totalorder %s15, 0
      %p35 = por %p33, %p34
      %p36 = scmp.ne.s32.totalorder %s25, %s28
      %p37 = scmp.eq.s32.totalorder %s20, 1
      %p38 = por %p36, %p37
      %p39 = scmp.ne.s32.totalorder %s28, %s29
      %p40 = scmp.eq.s32.totalorder %s20, 0
      %p41 = por %p39, %p40
      %p42 = scmp.ne.s32.totalorder %s28, %s29
      %p43 = scmp.eq.s32.totalorder %s21, 1
      %p44 = por %p42, %p43
      %p46 = scmp.ne.s32.totalorder %s29, %s45
      %p47 = scmp.eq.s32.totalorder %s21, 0
      %p48 = por %p46, %p47
      %s50 = sadd.s32 %s49, 1
      %p53 = scmp.eq.s32.totalorder %s15, 1
      %p54 = scmp.ne.s32.totalorder %s49, %s51
      %p55 = scmp.eq.s32.totalorder %s15, 0
      %p56 = por %p54, %p55
      %p57 = scmp.ne.s32.totalorder %s49, %s51
      %p58 = scmp.eq.s32.totalorder %s20, 1
      %p59 = por %p57, %p58
      %p60 = scmp.ne.s32.totalorder %s51, %s52
      %p61 = scmp.eq.s32.totalorder %s20, 0
      %p62 = por %p60, %p61
      %p63 = scmp.ne.s32.totalorder %s51, %s52
      %p64 = scmp.eq.s32.totalorder %s21, 1
      %p65 = por %p63, %p64
      %p67 = scmp.ne.s32.totalorder %s52, %s66
      %p68 = scmp.eq.s32.totalorder %s21, 0
      %p69 = por %p67, %p68
      %s71 = sadd.s32 %s70, 1
      %p74 = scmp.eq.s32.totalorder %s15, 1
      %p75 = scmp.ne.s32.totalorder %s70, %s72
      %p76 = scmp.eq.s32.totalorder %s15, 0
      %p77 = por %p75, %p76
      %p78 = scmp.ne.s32.totalorder %s70, %s72
      %p79 = scmp.eq.s32.totalorder %s20, 1
      %p80 = por %p78, %p79
      %p81 = scmp.ne.s32.totalorder %s72, %s73
      %p82 = scmp.eq.s32.totalorder %s20, 0
      %p83 = por %p81, %p82
      %p84 = scmp.ne.s32.totalorder %s72, %s73
      %p85 = scmp.eq.s32.totalorder %s21, 1
      %p86 = por %p84, %p85
      %p88 = scmp.ne.s32.totalorder %s73, %s87
      %p89 = scmp.eq.s32.totalorder %s21, 0
      %p90 = por %p88, %p89
      %s91 = ssub.s32 %s15, %s22
      %p92 = scmp.eq.s32.totalorder %s91, 0
      %s94 = sadd.s32 %s93, 1
      %s95 = scalar_select %p92, %s93, %s94
      %p98 = pneg %p92
      %p99 = scmp.eq.s32.totalorder %s15, 1
      %p100 = por %p98, %p99
      %p101 = scmp.ne.s32.totalorder %s93, %s96
      %p102 = scmp.eq.s32.totalorder %s15, 0
      %p103 = por %p101, %p102
      %p104 = scmp.ne.s32.totalorder %s93, %s96
      %p105 = scmp.eq.s32.totalorder %s20, 1
      %p106 = por %p104, %p105
      %p107 = scmp.ne.s32.totalorder %s96, %s97
      %p108 = scmp.eq.s32.totalorder %s20, 0
      %p109 = por %p107, %p108
      %p110 = scmp.ne.s32.totalorder %s96, %s97
      %p111 = scmp.eq.s32.totalorder %s21, 1
      %p112 = por %p110, %p111
      %p114 = scmp.ne.s32.totalorder %s97, %s113
      %p115 = scmp.eq.s32.totalorder %s21, 0
      %p116 = por %p114, %p115
      %p117 = scmp.le.s32.totalorder 1, %s15
      %p118 = scmp.lt.s32.totalorder %s15, 3
      %p119 = pnand %p117, %p118
      %p120 = pneg %p119
      // Predicated region
      $region9: #{layer_norm_fc.1} parent=5 // pred_check
        _
      $region10: #{layer_norm_fc.1} parent=5 // pred_check_branch
        %122 = sbr.rel (%p119) target = $region12
      $region11: #{layer_norm_fc.1} parent=5 // pred_region
        %s123 = ssub.s32 %s15, 1
        // Predicated region
        $region13: #{layer_norm_fc.1} parent=11 // pred_check
          %p124 = pneg %p62
        $region14: #{layer_norm_fc.1} parent=11 // pred_check_branch
          %126 = sbr.rel (%p124) target = $region16
        $region15: #{layer_norm_fc.1} parent=11 // pred_region
          _
        $region16: #{layer_norm_fc.1} parent=11 // pred_fallthru
          _
        // Predicated region
        $region17: #{layer_norm_fc.1} parent=11 // pred_check
          %p127 = pneg %p83
        $region18: #{layer_norm_fc.1} parent=11 // pred_check_branch
          %129 = sbr.rel (%p127) target = $region20
        $region19: #{layer_norm_fc.1} parent=11 // pred_region
          _
        $region20: #{layer_norm_fc.1} parent=11 // pred_fallthru
          _
      $region12: #{layer_norm_fc.1} parent=5 // pred_fallthru
        _
      %p130 = scmp.lt.s32.totalorder %s15, 2
      // Predicated region
      $region21: #{layer_norm_fc.1} parent=5 // pred_check
        %p131 = pneg %p130
      $region22: #{layer_norm_fc.1} parent=5 // pred_check_branch
        %133 = sbr.rel (%p131) target = $region24
      $region23: #{layer_norm_fc.1} parent=5 // pred_region
        // Predicated region
        $region25: #{layer_norm_fc.1} parent=23 // pred_check
          %p134 = pneg %p35
        $region26: #{layer_norm_fc.1} parent=23 // pred_check_branch
          %136 = sbr.rel (%p134) target = $region28
        $region27: #{layer_norm_fc.1} parent=23 // pred_region
          %s137 = sand.u32 %s25, 1
          %s138 = scalar_lea.sflag [#allocation3], %s137
          %s139 = sand.u32 %s25, 1
          %s140 = smul.addr %s139, 24
          %s141 = scalar_lea.vmem [#allocation2], %s140
          %s142 = smul.u32 3, %s15
          %s144 = ssub.s32 384, 384
          %145 = vsyncadd %s138, %s144
          %s146 = smul.addr %s142, 128
          %s147 = scalar_lea.hbm %s0, %s146
          %s148 = sshll.u32 %s141, 4
          %s149 = int_to_ptr.vmem [resolvable:$true] %s148
          %154 = dma.hbm_to_vmem [thread:$0]  %s147, 384, %s149, %s138, 128, 128, 8
        $region28: #{layer_norm_fc.1} parent=23 // pred_fallthru
          _
      $region24: #{layer_norm_fc.1} parent=5 // pred_fallthru
        _
      %p155 = scmp.le.s32.totalorder 1, %s15
      %p156 = scmp.lt.s32.totalorder %s15, 3
      %p157 = pnand %p155, %p156
      %p158 = pneg %p157
      // Predicated region
      $region29: #{layer_norm_fc.1} parent=5 // pred_check
        _
      $region30: #{layer_norm_fc.1} parent=5 // pred_check_branch
        %160 = sbr.rel (%p157) target = $region32
      $region31: #{layer_norm_fc.1} parent=5 // pred_region
        %s161 = ssub.s32 %s15, 1
        %s162 = sand.u32 %s28, 1
        %s163 = scalar_lea.sflag [#allocation3], %s162
        %s164 = sand.u32 %s28, 1
        %s165 = smul.addr %s164, 24
        %s166 = scalar_lea.vmem [#allocation2], %s165
        // Predicated region
        $region33: #{layer_norm_fc.1} parent=31 // pred_check
          %p167 = pneg %p41
        $region34: #{layer_norm_fc.1} parent=31 // pred_check_branch
          %169 = sbr.rel (%p167) target = $region36
        $region35: #{layer_norm_fc.1} parent=31 // pred_region
          %170 = dma.done %s163, 384
        $region36: #{layer_norm_fc.1} parent=31 // pred_fallthru
          _
        %s171 = sand.u32 %s28, 1
        %s172 = scalar_lea.sflag [#allocation3], %s171
        %s173 = sand.u32 %s28, 1
        %s174 = smul.addr %s173, 24
        %s175 = scalar_lea.vmem [#allocation2], %s174
        %p176 = pneg %p41
        %p177 = pneg %p38
        %p178 = pneg %p62
        %p179 = pneg %p59
        %p180 = pneg %p83
        %p181 = pneg %p80
        %p182 = pneg %p109
        %p183 = pneg %p106
        %s184 = sand.u32 %s96, 1
        %s185 = scalar_lea.sflag [#allocation4], %s184
        %s186 = sand.u32 %s96, 1
        %s187 = smul.addr %s186, 24
        %s188 = scalar_lea.vmem [#allocation5], %s187
        %s189 = smul.u32 3, %s20
        %s190 = smul.u32 3, %s20
        %v191 = vld [vmem:[%s166] sm:$0xff]
        %v192 = vld [vmem:[%s166 + $0x8] sm:$0xff]
        %v193 = vld [vmem:[%s166 + $0x10] sm:$0xff]
        %194 = vadd.xlane.f32.xlu0 %v191
        %v195 = vpop.xlane.xlu0 %194
        %196 = vadd.xlane.f32.xlu0 %v192
        %v197 = vpop.xlane.xlu0 %196
        %198 = vadd.xlane.f32.xlu0 %v193
        %v199 = vpop.xlane.xlu0 %198
        %v200 = vrcp.pop 128.0
        %v201 = vmul.f32 %v195, %v200
        %v202 = vmul.f32 %v197, %v200
        %v203 = vmul.f32 %v199, %v200
        %v204 = vsub.f32 %v191, %v201
        %v205 = vsub.f32 %v192, %v202
        %v206 = vsub.f32 %v193, %v203
        %v207 = vmul.f32 %v204, %v204
        %v208 = vmul.f32 %v205, %v205
        %v209 = vmul.f32 %v206, %v206
        %210 = vadd.xlane.f32.xlu0 %v207
        %v211 = vpop.xlane.xlu0 %210
        %212 = vadd.xlane.f32.xlu0 %v208
        %v213 = vpop.xlane.xlu0 %212
        %214 = vadd.xlane.f32.xlu0 %v209
        %v215 = vpop.xlane.xlu0 %214
        %v216 = vmul.f32 %v211, %v200
        %v217 = vmul.f32 %v213, %v200
        %v218 = vmul.f32 %v215, %v200
        %v219 = vadd.f32 %v216, 1e-05
        %v220 = vadd.f32 %v217, 1e-05
        %v221 = vadd.f32 %v218, 1e-05
        %v222 = vrsqrt.pop %v219
        %v223 = vrsqrt.pop %v220
        %v224 = vrsqrt.pop %v221
        %v225 = vld [vmem:[%s1] sm:$0x1]
        %v226 = vld [vmem:[%s2] sm:$0x1]
        %v227 = vmul.f32 %v204, %v222
        %v228 = vmul.f32 %v205, %v223
        %v229 = vmul.f32 %v206, %v224
        %v231 = vlaneseq
        %v232 = vshrl.u32 %v231, 7
        %v233 = vsub.s32 0, %v232
        %v234 = vrot.slane %v225, %v233
        %v236 = vmul.f32 %v227, %v234
        %v237 = vmul.f32 %v228, %v234
        %v238 = vmul.f32 %v229, %v234
        %v240 = vlaneseq
        %v241 = vshrl.u32 %v240, 7
        %v242 = vsub.s32 0, %v241
        %v243 = vrot.slane %v226, %v242
        %v245 = vadd.f32 %v236, %v243
        %v246 = vadd.f32 %v237, %v243
        %v247 = vadd.f32 %v238, %v243
        %248 = vst [vmem:[%s188] sm:$0xff] %v245
        %249 = vst [vmem:[%s188 + $0x8] sm:$0xff] %v246
        %250 = vst [vmem:[%s188 + $0x10] sm:$0xff] %v247
        %s251 = sand.u32 %s96, 1
        %s252 = scalar_lea.sflag [#allocation4], %s251
        %s253 = sand.u32 %s96, 1
        %s254 = smul.addr %s253, 24
        %s255 = scalar_lea.vmem [#allocation5], %s254
        // Predicated region
        $region37: #{layer_norm_fc.1} parent=31 // pred_check
          %p256 = pneg %p106
        $region38: #{layer_norm_fc.1} parent=31 // pred_check_branch
          %258 = sbr.rel (%p256) target = $region40
        $region39: #{layer_norm_fc.1} parent=31 // pred_region
          %s259 = smul.u32 3, %s20
          %s261 = ssub.s32 384, 384
          %262 = vsyncadd %s252, %s261
          %s263 = smul.addr %s259, 128
          %s264 = scalar_lea.hbm %s3, %s263
          %s265 = sshll.u32 %s255, 4
          %s266 = int_to_ptr.vmem [resolvable:$true] %s265
          %271 = dma.vmem_to_hbm [thread:$0]  %s266, 384, %s264, %s252, 128, 128, 8
        $region40: #{layer_norm_fc.1} parent=31 // pred_fallthru
          _
      $region32: #{layer_norm_fc.1} parent=5 // pred_fallthru
        _
      %p272 = scmp.le.s32.totalorder 2, %s15
      // Predicated region
      $region41: #{layer_norm_fc.1} parent=5 // pred_check
        %p273 = pneg %p272
      $region42: #{layer_norm_fc.1} parent=5 // pred_check_branch
        %275 = sbr.rel (%p273) target = $region44
      $region43: #{layer_norm_fc.1} parent=5 // pred_region
        %s276 = ssub.s32 %s15, 2
        // Predicated region
        $region45: #{layer_norm_fc.1} parent=43 // pred_check
          %p277 = pneg %p112
        $region46: #{layer_norm_fc.1} parent=43 // pred_check_branch
          %279 = sbr.rel (%p277) target = $region48
        $region47: #{layer_norm_fc.1} parent=43 // pred_region
          %s280 = sand.u32 %s97, 1
          %s281 = scalar_lea.sflag [#allocation4], %s280
          %s282 = sand.u32 %s97, 1
          %s283 = smul.addr %s282, 24
          %s284 = scalar_lea.vmem [#allocation5], %s283
          %285 = dma.done %s281, 384
        $region48: #{layer_norm_fc.1} parent=43 // pred_fallthru
          _
      $region44: #{layer_norm_fc.1} parent=5 // pred_fallthru
        _
    $region6: #{layer_norm_fc.1} parent=1 // loop_footer
      %s19 = sadd.s32 1, %s15
    $region7: #{layer_norm_fc.1} parent=1 // loop_footer_branch
      %14 = sbr.rel target = $region3
    $region8: #{layer_norm_fc.1} parent=1 // loop_exit
      _
    %286 = vsyncpa [#allocation3], 1
    %s287 = scalar_lea.sflag [#allocation3], 1
    %288 = vsyncpa %s287, 1
    %289 = vsyncpa [#allocation4], 1
    %s290 = scalar_lea.sflag [#allocation4], 1
    %291 = vsyncpa %s290, 1

</llo_original>
